<compile_context>
chip_gen: v5e
topology: v5e:2x2
jax: 0.10.0
libtpu: 0.0.40
codegen_flags: <defaults>
</compile_context>

<pallas_src>
import math
import numpy as np
import jax
import jax.numpy as jnp
from jax import lax
from jax.experimental import pallas as pl
from jax.experimental.pallas import tpu as pltpu

HIDDEN = 32          # opt.hidden_dim
NUM_HEADS = 8        # GATopt.num_attention_heads
HEAD_DIM = HIDDEN // NUM_HEADS
LN_EPS = 1e-12
L2_EPS = 1e-12


def _make_kernel(tb, n):
    """Kernel processing `tb` graphs of `n` nodes each per grid step."""
    r = tb * n
    nk = NUM_HEADS * n                 # packed (head, key-node) axis, lane-dense
    scale = 1.0 / math.sqrt(HEAD_DIM)

    def kernel(x_ref, qkvp_ref, outp_ref, o_ref):
        x = x_ref[...]                                   # (r, H) f32

        qkvp = qkvp_ref[...]                             # (H+1, 3H)
        w_qkv = qkvp[0:HIDDEN, :].astype(jnp.bfloat16)   # (H, 3H)  MXU operand
        b_qkv = qkvp[HIDDEN:HIDDEN + 1, :]               # (1, 3H)  f32

        outp = outp_ref[...]                             # (H+3, H)
        w_o = outp[0:HIDDEN, :].astype(jnp.bfloat16)     # (H, H)   MXU operand
        b_o = outp[HIDDEN:HIDDEN + 1, :]                 # (1, H)
        gamma = outp[HIDDEN + 1:HIDDEN + 2, :]
        beta = outp[HIDDEN + 2:HIDDEN + 3, :]

        # --- compile-time-shaped constants built from iota (no DMA'd operand) ---
        # head-indicator mask: head_mask[h, c] = 1 iff channel c belongs to head h
        hh = lax.broadcasted_iota(jnp.int32, (NUM_HEADS, HIDDEN), 0)
        cc = lax.broadcasted_iota(jnp.int32, (NUM_HEADS, HIDDEN), 1)
        head_mask = jnp.logical_and(cc >= hh * HEAD_DIM,
                                    cc < (hh + 1) * HEAD_DIM).astype(jnp.float32)
        # block-ones segment matrix: seg_ones[a, b] = 1 iff a, b in same head segment
        hh3 = lax.broadcasted_iota(jnp.int32, (NUM_HEADS, n, nk), 0)
        bb3 = lax.broadcasted_iota(jnp.int32, (NUM_HEADS, n, nk), 2)
        seg_ones = jnp.logical_and(bb3 >= hh3 * n,
                                   bb3 < (hh3 + 1) * n).astype(jnp.float32).reshape(nk, nk)

        # --- fused Q/K/V projection: one bf16 (r,32)@(32,96) MXU matmul ---
        qkv = jnp.dot(x.astype(jnp.bfloat16), w_qkv,
                      preferred_element_type=jnp.float32) + b_qkv       # (r, 3H)
        q = qkv[:, 0:HIDDEN]
        k = qkv[:, HIDDEN:2 * HIDDEN]
        v = qkv[:, 2 * HIDDEN:3 * HIDDEN]

        qb = q.reshape(tb, n, HIDDEN)
        kb = k.reshape(tb, n, HIDDEN)
        vb = v.reshape(tb, n, HIDDEN)

        # --- block-diagonal packed K / V (O(N*NH*H) VPU, no N^2*H intermediates) ---
        k_blk = (kb[:, None, :, :] * (head_mask * scale)[None, :, None, :]
                 ).reshape(tb, nk, HIDDEN)                              # (tb, nk, H)
        v_blk = (vb[:, None, :, :] * head_mask[None, :, None, :]
                 ).reshape(tb, nk, HIDDEN)                              # (tb, nk, H)

        # --- scores: per-graph (n,32)@(32,nk) bf16 MXU matmul, key axis on lanes ---
        s = lax.dot_general(qb.astype(jnp.bfloat16), k_blk.astype(jnp.bfloat16),
                            (((2,), (2,)), ((0,), (0,))),
                            preferred_element_type=jnp.float32)         # (tb, n, nk)
        s2 = s.reshape(r, nk)

        # per-row global max is a valid stabilizer for every per-head segment
        s2 = s2 - jnp.max(s2, axis=-1, keepdims=True)
        p_un = jnp.exp(s2)                                              # (r, nk)
        # per-head denominator expanded onto all nk lanes in one matmul
        denom = jnp.dot(p_un, seg_ones, preferred_element_type=jnp.float32)
        p = p_un * pl.reciprocal(denom, approx=True)                    # EUP reciprocal

        # --- context: per-graph (n,nk)@(nk,32) bf16 MXU matmul ---
        ctx = lax.dot_general(p.reshape(tb, n, nk).astype(jnp.bfloat16),
                              v_blk.astype(jnp.bfloat16),
                              (((2,), (1,)), ((0,), (0,))),
                              preferred_element_type=jnp.float32)       # (tb, n, H)
        ctx = ctx.reshape(r, HIDDEN)

        # --- output projection + residual + LayerNorm (f32 VPU/EUP) ---
        attn_out = jnp.dot(ctx.astype(jnp.bfloat16), w_o,
                           preferred_element_type=jnp.float32) + b_o
        hsum = attn_out + x
        mean = jnp.mean(hsum, axis=-1, keepdims=True)
        cent = hsum - mean
        var = jnp.mean(cent * cent, axis=-1, keepdims=True)
        normed = cent * lax.rsqrt(var + LN_EPS) * gamma + beta

        # --- l2norm over hidden dim: single EUP rsqrt ---
        sumsq = jnp.sum(normed * normed, axis=-1, keepdims=True)
        o_ref[...] = (normed * lax.rsqrt(sumsq + L2_EPS * L2_EPS)).astype(o_ref.dtype)

    return kernel


def _vmem_budget_bytes():
    """Half of physical VMEM (headroom for double-buffering / compiler temps)."""
    try:
        info = pltpu.get_tpu_info()
        cap = getattr(info, "vmem_capacity_bytes", None)
        if cap:
            return int(cap) // 2
    except Exception:
        pass
    return 32 * 1024 * 1024       # conservative: half of v7x's 64 MiB


def _num_tensorcores():
    try:
        info = pltpu.get_tpu_info()
        for attr in ("num_cores", "num_tensorcores", "core_count"):
            v = getattr(info, attr, None)
            if v:
                return int(v)
    except Exception:
        pass
    return 1


def _per_graph_bytes(N):
    """Rough f32 live-bytes per graph for the dominant in-kernel intermediates."""
    nk = NUM_HEADS * N
    return 4 * (2 * nk * HIDDEN        # k_blk, v_blk
                + 3 * N * nk           # s, p_un, p (lane-dense scores/probs)
                + 3 * N * HIDDEN       # fused qkv
                + 6 * N * HIDDEN)      # x, q/k/v, ctx, attn_out, normed (slack)


def _choose_batch_tile(B, N):
    budget = _vmem_budget_bytes()
    per_graph = max(_per_graph_bytes(N), 1)
    tb = max(1, min(B, budget // per_graph))
    # Split the batch across >=2 grid steps only on multi-TC chips (v7x) and
    # only when each half is big enough to amortize ~0.35 us/step overhead.
    if _num_tensorcores() >= 2 and B >= 2 and (B * N) // 2 >= 1024:
        tb = min(tb, max(1, B // 2))
    while B % tb != 0:                 # block shape must tile B exactly
        tb -= 1
    return tb


def joint_semantic_forward(x, params):
    """x: (B, N, H) float32.  params: (W (4,H,H) [q,k,v,o], aux (6,H) [bq,bk,bv,bo,gamma,beta])."""
    B, N, H = x.shape
    assert H == HIDDEN
    # TODO(synk): general N would need padding to a sublane multiple; toy N=8 is fine.
    assert N % 8 == 0, "node count must be a sublane multiple for clean layouts"
    w, aux = params

    # Pack parameters into 2 block-invariant operands (DMA'd once, stay resident).
    w_qkv = jnp.concatenate([w[0], w[1], w[2]], axis=1)                 # (H, 3H)
    b_qkv = jnp.concatenate([aux[0], aux[1], aux[2]])[None, :]          # (1, 3H)
    qkvp = jnp.concatenate([w_qkv, b_qkv], axis=0)                      # (H+1, 3H)
    outp = jnp.concatenate([w[3], aux[3:4], aux[4:5], aux[5:6]], axis=0)  # (H+3, H)

    tb = _choose_batch_tile(B, N)
    r = tb * N
    grid = (B // tb,)

    est_step_bytes = tb * _per_graph_bytes(N) + 4 * r * HIDDEN * 4      # + 2x-buffered io tiles
    vmem_limit = int(min(64 << 20, max(16 << 20, 4 * est_step_bytes)))

    # Flatten to a (B*N, H) slab: each step loads/stores one contiguous (r, H) block.
    x2 = x.reshape(B * N, H)

    out2 = pl.pallas_call(
        _make_kernel(tb, N),
        out_shape=jax.ShapeDtypeStruct((B * N, H), x.dtype),
        grid=grid,
        in_specs=[
            pl.BlockSpec((r, H), lambda b: (b, 0)),
            pl.BlockSpec(qkvp.shape, lambda b: (0, 0)),   # block-invariant params
            pl.BlockSpec(outp.shape, lambda b: (0, 0)),   # block-invariant params
        ],
        out_specs=pl.BlockSpec((r, H), lambda b: (b, 0)),
        compiler_params=pltpu.CompilerParams(
            dimension_semantics=("parallel",),
            vmem_limit_bytes=vmem_limit,
        ),
    )(x2, qkvp, outp)
    return out2.reshape(B, N, H)


def init_params(key, hidden):
    ks = jax.random.split(key, 10)
    std = 0.05
    # Linear weights stored pre-transposed as (in, out): y = x @ W + b.
    w = jnp.stack([jax.random.normal(ks[i], (hidden, hidden), jnp.float32) * std
                   for i in range(4)])                              # (4,H,H): q,k,v,o
    bq = jax.random.normal(ks[4], (hidden,), jnp.float32) * std
    bk = jax.random.normal(ks[5], (hidden,), jnp.float32) * std
    bv = jax.random.normal(ks[6], (hidden,), jnp.float32) * std
    bo = jax.random.normal(ks[7], (hidden,), jnp.float32) * std
    gamma = 1.0 + jax.random.normal(ks[8], (hidden,), jnp.float32) * std
    beta = jax.random.normal(ks[9], (hidden,), jnp.float32) * std
    aux = jnp.stack([bq, bk, bv, bo, gamma, beta])                  # (6, H)
    return (w, aux)


def reference_forward(x, params):
    """Pure-JAX reference mirroring the PyTorch semantics (eval mode)."""
    w, aux = params
    wq, wk, wv, wo = w[0], w[1], w[2], w[3]
    bq, bk, bv, bo, gamma, beta = aux[0], aux[1], aux[2], aux[3], aux[4], aux[5]
    B, N, H = x.shape
    q = x @ wq + bq
    k = x @ wk + bk
    v = x @ wv + bv
    qh = q.reshape(B, N, NUM_HEADS, HEAD_DIM).transpose(0, 2, 1, 3)
    kh = k.reshape(B, N, NUM_HEADS, HEAD_DIM).transpose(0, 2, 1, 3)
    vh = v.reshape(B, N, NUM_HEADS, HEAD_DIM).transpose(0, 2, 1, 3)
    s = jnp.einsum("bhqd,bhkd->bhqk", qh, kh) / math.sqrt(HEAD_DIM)
    p = jax.nn.softmax(s, axis=-1)
    ctx = jnp.einsum("bhqk,bhkd->bhqd", p, vh).transpose(0, 2, 1, 3).reshape(B, N, H)
    attn_out = ctx @ wo + bo
    hsum = attn_out + x
    mean = jnp.mean(hsum, axis=-1, keepdims=True)
    var = jnp.mean((hsum - mean) ** 2, axis=-1, keepdims=True)
    normed = (hsum - mean) / jnp.sqrt(var + LN_EPS) * gamma + beta
    nrm = jnp.sqrt(jnp.sum(normed ** 2, axis=-1, keepdims=True)) + L2_EPS
    return normed / nrm


if __name__ == "__main__":
    key = jax.random.PRNGKey(0)
    k_param, k_x = jax.random.split(key)

    B, N, H = 2, 8, HIDDEN
    params = init_params(k_param, H)
    raw_feature = jax.random.normal(k_x, (B, N, H), jnp.float32)

    out = joint_semantic_forward(raw_feature, params)
    out = jax.block_until_ready(out)

    ref = reference_forward(raw_feature, params)
    # Tolerance 5e-3: bf16 MXU operands + pl.reciprocal(approx=True) on the
    # softmax denominator per the performance review.
    np.testing.assert_allclose(np.asarray(out), np.asarray(ref), rtol=5e-3, atol=5e-3)

    print("KERNEL_OK")
</pallas_src>

<mosaic_0001>
module attributes {stable_mosaic.version = 11 : i64} {
  func.func @kernel(%arg0: i32, %arg1: memref<16x32xf32, #tpu.memory_space<vmem>>, %arg2: memref<33x96xf32, #tpu.memory_space<vmem>>, %arg3: memref<35x32xf32, #tpu.memory_space<vmem>>, %arg4: memref<16x32xf32, #tpu.memory_space<vmem>>) attributes {dimension_semantics = [#tpu.dimension_semantics<parallel>], iteration_bounds = array<i64: 1>, scalar_prefetch = 0 : i64, scratch_operands = 0 : i64, tpu.core_type = #tpu.core_type<tc>, window_params = [{transform_indices = @transform_0, window_bounds = array<i64: 16, 32>}, {pipeline_mode = #tpu.pipeline_mode<synchronous>, transform_indices = @transform_1, window_bounds = array<i64: 33, 96>}, {pipeline_mode = #tpu.pipeline_mode<synchronous>, transform_indices = @transform_2, window_bounds = array<i64: 35, 32>}, {transform_indices = @transform_3, window_bounds = array<i64: 16, 32>}]} {
    %c0 = arith.constant 0 : index
    %c0_0 = arith.constant 0 : index
    %0 = vector.load %arg1[%c0, %c0_0] : memref<16x32xf32, #tpu.memory_space<vmem>>, vector<16x32xf32>
    %c0_1 = arith.constant 0 : index
    %c0_2 = arith.constant 0 : index
    %1 = vector.load %arg2[%c0_1, %c0_2] : memref<33x96xf32, #tpu.memory_space<vmem>>, vector<33x96xf32>
    %2 = vector.extract_strided_slice %1 {offsets = [0, 0], sizes = [32, 96], strides = [1, 1]} : vector<33x96xf32> to vector<32x96xf32>
    %3 = arith.truncf %2 : vector<32x96xf32> to vector<32x96xbf16>
    %4 = vector.extract_strided_slice %1 {offsets = [32, 0], sizes = [1, 96], strides = [1, 1]} : vector<33x96xf32> to vector<1x96xf32>
    %c0_3 = arith.constant 0 : index
    %c0_4 = arith.constant 0 : index
    %5 = vector.load %arg3[%c0_3, %c0_4] : memref<35x32xf32, #tpu.memory_space<vmem>>, vector<35x32xf32>
    %6 = vector.extract_strided_slice %5 {offsets = [0, 0], sizes = [32, 32], strides = [1, 1]} : vector<35x32xf32> to vector<32x32xf32>
    %7 = arith.truncf %6 : vector<32x32xf32> to vector<32x32xbf16>
    %8 = vector.extract_strided_slice %5 {offsets = [32, 0], sizes = [1, 32], strides = [1, 1]} : vector<35x32xf32> to vector<1x32xf32>
    %9 = vector.extract_strided_slice %5 {offsets = [33, 0], sizes = [1, 32], strides = [1, 1]} : vector<35x32xf32> to vector<1x32xf32>
    %10 = vector.extract_strided_slice %5 {offsets = [34, 0], sizes = [1, 32], strides = [1, 1]} : vector<35x32xf32> to vector<1x32xf32>
    %11 = tpu.iota {dimensions = array<i32: 0>} : vector<8x32xi32>
    %12 = tpu.iota {dimensions = array<i32: 1>} : vector<8x32xi32>
    %c4_i32 = arith.constant 4 : i32
    %13 = vector.broadcast %c4_i32 : i32 to vector<8x32xi32>
    %14 = arith.muli %11, %13 : vector<8x32xi32>
    %15 = arith.cmpi sge, %12, %14 : vector<8x32xi32>
    %c1_i32 = arith.constant 1 : i32
    %16 = vector.broadcast %c1_i32 : i32 to vector<8x32xi32>
    %17 = arith.addi %11, %16 : vector<8x32xi32>
    %c4_i32_5 = arith.constant 4 : i32
    %18 = vector.broadcast %c4_i32_5 : i32 to vector<8x32xi32>
    %19 = arith.muli %17, %18 : vector<8x32xi32>
    %20 = arith.cmpi slt, %12, %19 : vector<8x32xi32>
    %21 = arith.andi %15, %20 : vector<8x32xi1>
    %22 = arith.extui %21 : vector<8x32xi1> to vector<8x32xi32>
    %23 = arith.sitofp %22 : vector<8x32xi32> to vector<8x32xf32>
    %24 = tpu.iota {dimensions = array<i32: 0>} : vector<8x8x64xi32>
    %25 = tpu.iota {dimensions = array<i32: 2>} : vector<8x8x64xi32>
    %c8_i32 = arith.constant 8 : i32
    %26 = vector.broadcast %c8_i32 : i32 to vector<8x8x64xi32>
    %27 = arith.muli %24, %26 : vector<8x8x64xi32>
    %28 = arith.cmpi sge, %25, %27 : vector<8x8x64xi32>
    %c1_i32_6 = arith.constant 1 : i32
    %29 = vector.broadcast %c1_i32_6 : i32 to vector<8x8x64xi32>
    %30 = arith.addi %24, %29 : vector<8x8x64xi32>
    %c8_i32_7 = arith.constant 8 : i32
    %31 = vector.broadcast %c8_i32_7 : i32 to vector<8x8x64xi32>
    %32 = arith.muli %30, %31 : vector<8x8x64xi32>
    %33 = arith.cmpi slt, %25, %32 : vector<8x8x64xi32>
    %34 = arith.andi %28, %33 : vector<8x8x64xi1>
    %35 = arith.extui %34 : vector<8x8x64xi1> to vector<8x8x64xi32>
    %36 = arith.sitofp %35 : vector<8x8x64xi32> to vector<8x8x64xf32>
    %37 = vector.shape_cast %36 : vector<8x8x64xf32> to vector<64x64xf32>
    %38 = arith.truncf %0 : vector<16x32xf32> to vector<16x32xbf16>
    %cst = arith.constant dense<0.000000e+00> : vector<16x96xf32>
    %39 = tpu.matmul %38, %3, %cst {dimension_numbers = #tpu.dot_dimension_numbers<[1], [0], [0], [1], [0, 0, 1, 1], [], []>} : vector<16x32xbf16>, vector<32x96xbf16>, vector<16x96xf32> -> vector<16x96xf32>
    %40 = vector.broadcast %4 : vector<1x96xf32> to vector<16x96xf32>
    %41 = arith.addf %39, %40 : vector<16x96xf32>
    %42 = vector.extract_strided_slice %41 {offsets = [0, 0], sizes = [16, 32], strides = [1, 1]} : vector<16x96xf32> to vector<16x32xf32>
    %43 = vector.extract_strided_slice %41 {offsets = [0, 32], sizes = [16, 32], strides = [1, 1]} : vector<16x96xf32> to vector<16x32xf32>
    %44 = vector.extract_strided_slice %41 {offsets = [0, 64], sizes = [16, 32], strides = [1, 1]} : vector<16x96xf32> to vector<16x32xf32>
    %45 = vector.shape_cast %42 : vector<16x32xf32> to vector<2x8x32xf32>
    %46 = vector.shape_cast %43 : vector<16x32xf32> to vector<2x8x32xf32>
    %47 = vector.shape_cast %44 : vector<16x32xf32> to vector<2x8x32xf32>
    %48 = vector.shape_cast %46 : vector<2x8x32xf32> to vector<2x1x8x32xf32>
    %cst_8 = arith.constant 5.000000e-01 : f32
    %49 = vector.broadcast %cst_8 : f32 to vector<8x32xf32>
    %50 = arith.mulf %23, %49 : vector<8x32xf32>
    %51 = vector.shape_cast %50 : vector<8x32xf32> to vector<1x8x1x32xf32>
    %52 = vector.broadcast %48 : vector<2x1x8x32xf32> to vector<2x8x8x32xf32>
    %53 = vector.broadcast %51 : vector<1x8x1x32xf32> to vector<2x8x8x32xf32>
    %54 = arith.mulf %52, %53 : vector<2x8x8x32xf32>
    %55 = vector.shape_cast %54 : vector<2x8x8x32xf32> to vector<2x64x32xf32>
    %56 = vector.shape_cast %47 : vector<2x8x32xf32> to vector<2x1x8x32xf32>
    %57 = vector.shape_cast %23 : vector<8x32xf32> to vector<1x8x1x32xf32>
    %58 = vector.broadcast %56 : vector<2x1x8x32xf32> to vector<2x8x8x32xf32>
    %59 = vector.broadcast %57 : vector<1x8x1x32xf32> to vector<2x8x8x32xf32>
    %60 = arith.mulf %58, %59 : vector<2x8x8x32xf32>
    %61 = vector.shape_cast %60 : vector<2x8x8x32xf32> to vector<2x64x32xf32>
    %62 = arith.truncf %45 : vector<2x8x32xf32> to vector<2x8x32xbf16>
    %63 = arith.truncf %55 : vector<2x64x32xf32> to vector<2x64x32xbf16>
    %cst_9 = arith.constant dense<0.000000e+00> : vector<2x8x64xf32>
    %64 = tpu.matmul %62, %63, %cst_9 {dimension_numbers = #tpu.dot_dimension_numbers<[2], [2], [1], [1], [0, 0, 0, 1, 1, 1], [0], [0]>} : vector<2x8x32xbf16>, vector<2x64x32xbf16>, vector<2x8x64xf32> -> vector<2x8x64xf32>
    %65 = vector.shape_cast %64 : vector<2x8x64xf32> to vector<16x64xf32>
    %cst_10 = arith.constant dense<0xFF800000> : vector<16xf32>
    %66 = vector.multi_reduction <maximumf>, %65, %cst_10 [1] : vector<16x64xf32> to vector<16xf32>
    %67 = vector.shape_cast %66 : vector<16xf32> to vector<16x1xf32>
    %68 = vector.broadcast %67 : vector<16x1xf32> to vector<16x64xf32>
    %69 = arith.subf %65, %68 : vector<16x64xf32>
    %70 = math.exp %69 : vector<16x64xf32>
    %cst_11 = arith.constant dense<0.000000e+00> : vector<16x64xf32>
    %71 = tpu.matmul %70, %37, %cst_11 {dimension_numbers = #tpu.dot_dimension_numbers<[1], [0], [0], [1], [0, 0, 1, 1], [], []>} : vector<16x64xf32>, vector<64x64xf32>, vector<16x64xf32> -> vector<16x64xf32>
    %72 = tpu.reciprocal %71 {approx = true} : vector<16x64xf32> -> vector<16x64xf32>
    %73 = arith.mulf %70, %72 : vector<16x64xf32>
    %74 = vector.shape_cast %73 : vector<16x64xf32> to vector<2x8x64xf32>
    %75 = arith.truncf %74 : vector<2x8x64xf32> to vector<2x8x64xbf16>
    %76 = arith.truncf %61 : vector<2x64x32xf32> to vector<2x64x32xbf16>
    %cst_12 = arith.constant dense<0.000000e+00> : vector<2x8x32xf32>
    %77 = tpu.matmul %75, %76, %cst_12 {dimension_numbers = #tpu.dot_dimension_numbers<[2], [1], [1], [2], [0, 0, 0, 1, 1, 2], [0], [0]>} : vector<2x8x64xbf16>, vector<2x64x32xbf16>, vector<2x8x32xf32> -> vector<2x8x32xf32>
    %78 = vector.shape_cast %77 : vector<2x8x32xf32> to vector<16x32xf32>
    %79 = arith.truncf %78 : vector<16x32xf32> to vector<16x32xbf16>
    %cst_13 = arith.constant dense<0.000000e+00> : vector<16x32xf32>
    %80 = tpu.matmul %79, %7, %cst_13 {dimension_numbers = #tpu.dot_dimension_numbers<[1], [0], [0], [1], [0, 0, 1, 1], [], []>} : vector<16x32xbf16>, vector<32x32xbf16>, vector<16x32xf32> -> vector<16x32xf32>
    %81 = vector.broadcast %8 : vector<1x32xf32> to vector<16x32xf32>
    %82 = arith.addf %80, %81 : vector<16x32xf32>
    %83 = arith.addf %82, %0 : vector<16x32xf32>
    %cst_14 = arith.constant dense<0.000000e+00> : vector<16xf32>
    %84 = vector.multi_reduction <add>, %83, %cst_14 [1] : vector<16x32xf32> to vector<16xf32>
    %85 = vector.shape_cast %84 : vector<16xf32> to vector<16x1xf32>
    %cst_15 = arith.constant 3.200000e+01 : f32
    %86 = vector.broadcast %cst_15 : f32 to vector<16x1xf32>
    %87 = arith.divf %85, %86 : vector<16x1xf32>
    %88 = vector.broadcast %87 : vector<16x1xf32> to vector<16x32xf32>
    %89 = arith.subf %83, %88 : vector<16x32xf32>
    %90 = arith.mulf %89, %89 : vector<16x32xf32>
    %cst_16 = arith.constant dense<0.000000e+00> : vector<16xf32>
    %91 = vector.multi_reduction <add>, %90, %cst_16 [1] : vector<16x32xf32> to vector<16xf32>
    %92 = vector.shape_cast %91 : vector<16xf32> to vector<16x1xf32>
    %cst_17 = arith.constant 3.200000e+01 : f32
    %93 = vector.broadcast %cst_17 : f32 to vector<16x1xf32>
    %94 = arith.divf %92, %93 : vector<16x1xf32>
    %cst_18 = arith.constant 9.99999996E-13 : f32
    %95 = vector.broadcast %cst_18 : f32 to vector<16x1xf32>
    %96 = arith.addf %94, %95 : vector<16x1xf32>
    %97 = math.rsqrt %96 : vector<16x1xf32>
    %98 = vector.broadcast %97 : vector<16x1xf32> to vector<16x32xf32>
    %99 = arith.mulf %89, %98 : vector<16x32xf32>
    %100 = vector.broadcast %9 : vector<1x32xf32> to vector<16x32xf32>
    %101 = arith.mulf %99, %100 : vector<16x32xf32>
    %102 = vector.broadcast %10 : vector<1x32xf32> to vector<16x32xf32>
    %103 = arith.addf %101, %102 : vector<16x32xf32>
    %104 = arith.mulf %103, %103 : vector<16x32xf32>
    %cst_19 = arith.constant dense<0.000000e+00> : vector<16xf32>
    %105 = vector.multi_reduction <add>, %104, %cst_19 [1] : vector<16x32xf32> to vector<16xf32>
    %106 = vector.shape_cast %105 : vector<16xf32> to vector<16x1xf32>
    %cst_20 = arith.constant 1.000000e-24 : f32
    %107 = vector.broadcast %cst_20 : f32 to vector<16x1xf32>
    %108 = arith.addf %106, %107 : vector<16x1xf32>
    %109 = math.rsqrt %108 : vector<16x1xf32>
    %110 = vector.broadcast %109 : vector<16x1xf32> to vector<16x32xf32>
    %111 = arith.mulf %103, %110 : vector<16x32xf32>
    %c0_21 = arith.constant 0 : index
    %c0_22 = arith.constant 0 : index
    %112 = vector.load %arg4[%c0_21, %c0_22] : memref<16x32xf32, #tpu.memory_space<vmem>>, vector<16x32xf32>
    tpu.vector_store %arg4[%c0_21, %c0_22], %111 {strides = array<i32>} : memref<16x32xf32, #tpu.memory_space<vmem>>, vector<16x32xf32>,
    return
  }
  func.func @transform_0(%arg0: i32) -> (i32, i32) {
    %c0_i32 = arith.constant 0 : i32
    %c0_i32_0 = arith.constant 0 : i32
    return %arg0, %c0_i32 : i32, i32
  }
  func.func @transform_1(%arg0: i32) -> (i32, i32) {
    %c0_i32 = arith.constant 0 : i32
    %c0_i32_0 = arith.constant 0 : i32
    %c0_i32_1 = arith.constant 0 : i32
    return %c0_i32, %c0_i32_0 : i32, i32
  }
  func.func @transform_2(%arg0: i32) -> (i32, i32) {
    %c0_i32 = arith.constant 0 : i32
    %c0_i32_0 = arith.constant 0 : i32
    %c0_i32_1 = arith.constant 0 : i32
    return %c0_i32, %c0_i32_0 : i32, i32
  }
  func.func @transform_3(%arg0: i32) -> (i32, i32) {
    %c0_i32 = arith.constant 0 : i32
    %c0_i32_0 = arith.constant 0 : i32
    return %arg0, %c0_i32 : i32, i32
  }
}

</mosaic_0001>

<llo_original>
// kernel: tpu_custom_call.1
$region0: #{tpu_custom_call.1}
  #allocation0 [shape = 'u32[]', space=smem, size = 0x4, offset = 0x4, fixed_abs, tag = 'smem constant byte address 0x4 - core index']
  #allocation1 [shape = 'u32[72,128]{1,0:T(1,128)}', space=vmem, size = 0x9000, scoped, tag = 'internal scratch']
  %s0 = inlined_call_operand.vmem [shape: f32[16,32], index: 0, kind: input, shape index: {}]
  %s1 = inlined_call_operand.vmem [shape: f32[33,96], index: 1, kind: input, shape index: {}]
  %s2 = inlined_call_operand.vmem [shape: f32[35,32], index: 2, kind: input, shape index: {}]
  %s3 = inlined_call_operand.hbm [shape: f32[16,32], index: 3, kind: output, shape index: {}]
  %s4 = sld [smem:[#allocation0]]
  $region22: #{tpu_custom_call.1} parent=0
    _
  %s6 = ssub.s32 1, %s4
  %s7 = scalar_select 0, %s6, %s4
  $region1: #{tpu_custom_call.1} parent=0
    #allocation2 [shape = 'u8[8192]{0}', space=vmem, size = 0x2000, scoped, tag = 'output window, operand 0, single buffered']
    #allocation3 [shape = 's32[1]{0}', space=sflag, size = 0x4, scoped, tag = 'scoped memory for tpu_custom_call.1']
    %8 = vsyncpa [#allocation3], 0
    // Predicated region
    $region2: #{tpu_custom_call.1} parent=1 // pred_check
      _
    $region3: #{tpu_custom_call.1} parent=1 // pred_check_branch
      %10 = sbr.rel (0) target = $region5
    $region4: #{tpu_custom_call.1} parent=1 // pred_region
      _
    $region5: #{tpu_custom_call.1} parent=1 // pred_fallthru
      _
    // Predicated region
    $region6: #{tpu_custom_call.1} parent=1 // pred_check
      _
    $region7: #{tpu_custom_call.1} parent=1 // pred_check_branch
      %12 = sbr.rel (0) target = $region9
    $region8: #{tpu_custom_call.1} parent=1 // pred_region
      _
    $region9: #{tpu_custom_call.1} parent=1 // pred_fallthru
      _
    // Predicated region
    $region10: #{tpu_custom_call.1} parent=1 // pred_check
      _
    $region11: #{tpu_custom_call.1} parent=1 // pred_check_branch
      %14 = sbr.rel (0) target = $region13
    $region12: #{tpu_custom_call.1} parent=1 // pred_region
      _
    $region13: #{tpu_custom_call.1} parent=1 // pred_fallthru
      _
    %v16 = vld [vmem:[%s0] sm:$0xff]
    %v17 = vld [vmem:[%s0 + $0x8] sm:$0xff]
    %v18 = vld [vmem:[%s1] sm:$0xff]
    %v19 = vld [vmem:[%s1 + $0x8] sm:$0xff]
    %v20 = vld [vmem:[%s1 + $0x10] sm:$0xff]
    %v21 = vld [vmem:[%s1 + $0x18] sm:$0xff]
    %v22 = vld [vmem:[%s1 + $0x20] sm:$0x1]
    %v23 = vpack.c.bf16 %v19, %v18
    %v24 = vpack.c.bf16 %v21, %v20
    %v25 = vld [vmem:[%s2] sm:$0xff]
    %v26 = vld [vmem:[%s2 + $0x8] sm:$0xff]
    %v27 = vld [vmem:[%s2 + $0x10] sm:$0xff]
    %v28 = vld [vmem:[%s2 + $0x18] sm:$0xff]
    %v29 = vld [vmem:[%s2 + $0x20] sm:$0x7]
    %v30 = vpack.c.bf16 %v26, %v25
    %v31 = vpack.c.bf16 %v28, %v27
    %v32 = vlaneseq
    %v33 = vshrl.u32 %v32, 7
    %v34 = vlaneseq
    %v35 = vand.u32 %v34, 127
    %v36 = vmul.u32 %v33, 4
    %vm37 = vcmp.ge.s32.totalorder %v35, %v36
    %v38 = vadd.s32 %v33, 1
    %v39 = vmul.u32 %v38, 4
    %vm40 = vcmp.lt.s32.totalorder %v35, %v39
    %vm41 = vmand %vm37, %vm40
    %v42 = vsel %vm41, 1, 0
    %v43 = vcvt.s32.f32 %v42
    %vm44 = vcmp.ge.s32.totalorder %v35, 0
    %vm45 = vcmp.ge.s32.totalorder %v35, 8
    %vm46 = vcmp.ge.s32.totalorder %v35, 16
    %vm47 = vcmp.ge.s32.totalorder %v35, 24
    %vm48 = vcmp.ge.s32.totalorder %v35, 32
    %vm49 = vcmp.ge.s32.totalorder %v35, 40
    %vm50 = vcmp.ge.s32.totalorder %v35, 48
    %vm51 = vcmp.ge.s32.totalorder %v35, 56
    %vm52 = vcmp.lt.s32.totalorder %v35, 8
    %vm53 = vcmp.lt.s32.totalorder %v35, 16
    %vm54 = vcmp.lt.s32.totalorder %v35, 24
    %vm55 = vcmp.lt.s32.totalorder %v35, 32
    %vm56 = vcmp.lt.s32.totalorder %v35, 40
    %vm57 = vcmp.lt.s32.totalorder %v35, 48
    %vm58 = vcmp.lt.s32.totalorder %v35, 56
    %vm59 = vcmp.lt.s32.totalorder %v35, 64
    %vm60 = vmand %vm44, %vm52
    %vm61 = vmand %vm45, %vm53
    %vm62 = vmand %vm46, %vm54
    %vm63 = vmand %vm47, %vm55
    %vm64 = vmand %vm48, %vm56
    %vm65 = vmand %vm49, %vm57
    %vm66 = vmand %vm50, %vm58
    %vm67 = vmand %vm51, %vm59
    %v68 = vsel %vm60, 1, 0
    %v69 = vsel %vm61, 1, 0
    %v70 = vsel %vm62, 1, 0
    %v71 = vsel %vm63, 1, 0
    %v72 = vsel %vm64, 1, 0
    %v73 = vsel %vm65, 1, 0
    %v74 = vsel %vm66, 1, 0
    %v75 = vsel %vm67, 1, 0
    %v76 = vcvt.s32.f32 %v68
    %v77 = vcvt.s32.f32 %v69
    %v78 = vcvt.s32.f32 %v70
    %v79 = vcvt.s32.f32 %v71
    %v80 = vcvt.s32.f32 %v72
    %v81 = vcvt.s32.f32 %v73
    %v82 = vcvt.s32.f32 %v74
    %v83 = vcvt.s32.f32 %v75
    %v84 = vpack.c.bf16 %v17, %v16
    %v85 = vperm.slane %v22, 0
    %vm86 = vcmask 261120
    %v88 = vsel %vm86, %v84, 0
    %90 = vmatpush.bf16.msra.mxu0 0
    %91 = vmatpush.bf16.msra.mxu0 0
    %92 = vmatpush.bf16.msra.mxu0 0
    %93 = vmatpush.bf16.msra.mxu0 0
    %94 = vmatpush.bf16.msra.mxu0 0
    %95 = vmatpush.bf16.msra.mxu0 0
    %96 = vmatpush.bf16.msra.mxu0 %v24
    %97 = vmatpush.bf16.msra.mxu0 %v23
    %98 = vmatmul.bf16.gmra.mxu0 %v88
    %v99 = vpop.f32.mrf.mxu0
    %v100 = vadd.f32 %v85, %v99
    %v101 = vpop.f32.mrf.mxu0
    %v102 = vadd.f32 %v85, %v101
    %103 = vdwg.mxu0
    %v104 = vmul.f32 %v43, 0.5
    %v106 = vrot.slane %v104, 1
    %v107 = vrot.slane %v104, 2
    %v108 = vrot.slane %v104, 3
    %v109 = vrot.slane %v104, 4
    %v110 = vrot.slane %v104, 5
    %v111 = vrot.slane %v104, 6
    %v112 = vrot.slane %v104, 7
    %v113 = vperm.slane %v104, 0
    %v114 = vperm.slane %v106, 0
    %v115 = vperm.slane %v107, 0
    %v116 = vperm.slane %v108, 0
    %v117 = vperm.slane %v109, 0
    %v118 = vperm.slane %v110, 0
    %v119 = vperm.slane %v111, 0
    %v120 = vperm.slane %v112, 0
    %121 = vrot.lane.b32.xlu0 %v113, 32
    %v122 = vpop.permute.xlu0 %121
    %123 = vrot.lane.b32.xlu0 %v114, 32
    %v124 = vpop.permute.xlu0 %123
    %125 = vrot.lane.b32.xlu0 %v115, 32
    %v126 = vpop.permute.xlu0 %125
    %127 = vrot.lane.b32.xlu0 %v116, 32
    %v128 = vpop.permute.xlu0 %127
    %129 = vrot.lane.b32.xlu0 %v117, 32
    %v130 = vpop.permute.xlu0 %129
    %131 = vrot.lane.b32.xlu0 %v118, 32
    %v132 = vpop.permute.xlu0 %131
    %133 = vrot.lane.b32.xlu0 %v119, 32
    %v134 = vpop.permute.xlu0 %133
    %135 = vrot.lane.b32.xlu0 %v120, 32
    %v136 = vpop.permute.xlu0 %135
    %v145 = vmul.f32 %v100, %v122
    %v146 = vmul.f32 %v100, %v124
    %v147 = vmul.f32 %v100, %v126
    %v148 = vmul.f32 %v100, %v128
    %v149 = vmul.f32 %v100, %v130
    %v150 = vmul.f32 %v100, %v132
    %v151 = vmul.f32 %v100, %v134
    %v152 = vmul.f32 %v100, %v136
    %v153 = vmul.f32 %v102, %v122
    %v154 = vmul.f32 %v102, %v124
    %v155 = vmul.f32 %v102, %v126
    %v156 = vmul.f32 %v102, %v128
    %v157 = vmul.f32 %v102, %v130
    %v158 = vmul.f32 %v102, %v132
    %v159 = vmul.f32 %v102, %v134
    %v160 = vmul.f32 %v102, %v136
    %v162 = vrot.slane %v43, 1
    %v163 = vrot.slane %v43, 2
    %v164 = vrot.slane %v43, 3
    %v165 = vrot.slane %v43, 4
    %v166 = vrot.slane %v43, 5
    %v167 = vrot.slane %v43, 6
    %v168 = vrot.slane %v43, 7
    %v169 = vperm.slane %v43, 0
    %v170 = vperm.slane %v162, 0
    %v171 = vperm.slane %v163, 0
    %v172 = vperm.slane %v164, 0
    %v173 = vperm.slane %v165, 0
    %v174 = vperm.slane %v166, 0
    %v175 = vperm.slane %v167, 0
    %v176 = vperm.slane %v168, 0
    %177 = vrot.lane.b32.xlu0 %v169, 64
    %v178 = vpop.permute.xlu0 %177
    %179 = vrot.lane.b32.xlu0 %v170, 64
    %v180 = vpop.permute.xlu0 %179
    %181 = vrot.lane.b32.xlu0 %v171, 64
    %v182 = vpop.permute.xlu0 %181
    %183 = vrot.lane.b32.xlu0 %v172, 64
    %v184 = vpop.permute.xlu0 %183
    %185 = vrot.lane.b32.xlu0 %v173, 64
    %v186 = vpop.permute.xlu0 %185
    %187 = vrot.lane.b32.xlu0 %v174, 64
    %v188 = vpop.permute.xlu0 %187
    %189 = vrot.lane.b32.xlu0 %v175, 64
    %v190 = vpop.permute.xlu0 %189
    %191 = vrot.lane.b32.xlu0 %v176, 64
    %v192 = vpop.permute.xlu0 %191
    %v201 = vmul.f32 %v100, %v178
    %v202 = vmul.f32 %v100, %v180
    %v203 = vmul.f32 %v100, %v182
    %v204 = vmul.f32 %v100, %v184
    %v205 = vmul.f32 %v100, %v186
    %v206 = vmul.f32 %v100, %v188
    %v207 = vmul.f32 %v100, %v190
    %v208 = vmul.f32 %v100, %v192
    %v209 = vmul.f32 %v102, %v178
    %v210 = vmul.f32 %v102, %v180
    %v211 = vmul.f32 %v102, %v182
    %v212 = vmul.f32 %v102, %v184
    %v213 = vmul.f32 %v102, %v186
    %v214 = vmul.f32 %v102, %v188
    %v215 = vmul.f32 %v102, %v190
    %v216 = vmul.f32 %v102, %v192
    %v217 = vpack.c.bf16 %v100, %v100
    %v218 = vpack.c.bf16 %v102, %v102
    %v219 = vpack.c.bf16 %v145, %v145
    %v220 = vpack.c.bf16 %v146, %v146
    %v221 = vpack.c.bf16 %v147, %v147
    %v222 = vpack.c.bf16 %v148, %v148
    %v223 = vpack.c.bf16 %v149, %v149
    %v224 = vpack.c.bf16 %v150, %v150
    %v225 = vpack.c.bf16 %v151, %v151
    %v226 = vpack.c.bf16 %v152, %v152
    %v227 = vpack.c.bf16 %v153, %v153
    %v228 = vpack.c.bf16 %v154, %v154
    %v229 = vpack.c.bf16 %v155, %v155
    %v230 = vpack.c.bf16 %v156, %v156
    %v231 = vpack.c.bf16 %v157, %v157
    %v232 = vpack.c.bf16 %v158, %v158
    %v233 = vpack.c.bf16 %v159, %v159
    %v234 = vpack.c.bf16 %v160, %v160
    %v243 = vunpack.c.l.b16 %v219
    %v244 = vunpack.c.l.b16 %v220
    %v245 = vunpack.c.l.b16 %v221
    %v246 = vunpack.c.l.b16 %v222
    %v247 = vunpack.c.l.b16 %v223
    %v248 = vunpack.c.l.b16 %v224
    %v249 = vunpack.c.l.b16 %v225
    %v250 = vunpack.c.l.b16 %v226
    %v251 = vpack.c.b16 %v244, %v243
    %v252 = vpack.c.b16 %v246, %v245
    %v253 = vpack.c.b16 %v248, %v247
    %v254 = vpack.c.b16 %v250, %v249
    %255 = vrot.lane.b32.xlu0 %v251, 96
    %v256 = vpop.permute.xlu0 %255
    %257 = vrot.lane.b32.xlu0 %v252, 96
    %v258 = vpop.permute.xlu0 %257
    %259 = vrot.lane.b32.xlu0 %v253, 96
    %v260 = vpop.permute.xlu0 %259
    %261 = vrot.lane.b32.xlu0 %v254, 96
    %v262 = vpop.permute.xlu0 %261
    %v264 = vsel %vm86, %v217, 0
    %v267 = vsel %vm86, %v256, 0
    %v270 = vsel %vm86, %v258, 0
    %v273 = vsel %vm86, %v260, 0
    %v276 = vsel %vm86, %v262, 0
    %278 = vmatpush.bf16.xpose.msra.mxu0 0
    %279 = vmatpush.bf16.xpose.msra.mxu0 0
    %280 = vmatpush.bf16.xpose.msra.mxu0 0
    %281 = vmatpush.bf16.xpose.msra.mxu0 0
    %282 = vmatpush.bf16.xpose.msra.mxu0 %v276
    %283 = vmatpush.bf16.xpose.msra.mxu0 %v273
    %284 = vmatpush.bf16.xpose.msra.mxu0 %v270
    %285 = vmatpush.bf16.xpose.msra.mxu0 %v267
    %286 = vmatmul.bf16.gmra.mxu0 %v264
    %v287 = vpop.f32.mrf.mxu0
    %v288 = vadd.f32 0.0, %v287
    %v289 = vpop.f32.mrf.mxu0
    %290 = vdwg.mxu0
    %v299 = vunpack.c.l.b16 %v227
    %v300 = vunpack.c.l.b16 %v228
    %v301 = vunpack.c.l.b16 %v229
    %v302 = vunpack.c.l.b16 %v230
    %v303 = vunpack.c.l.b16 %v231
    %v304 = vunpack.c.l.b16 %v232
    %v305 = vunpack.c.l.b16 %v233
    %v306 = vunpack.c.l.b16 %v234
    %v307 = vpack.c.b16 %v300, %v299
    %v308 = vpack.c.b16 %v302, %v301
    %v309 = vpack.c.b16 %v304, %v303
    %v310 = vpack.c.b16 %v306, %v305
    %311 = vrot.lane.b32.xlu0 %v307, 96
    %v312 = vpop.permute.xlu0 %311
    %313 = vrot.lane.b32.xlu0 %v308, 96
    %v314 = vpop.permute.xlu0 %313
    %315 = vrot.lane.b32.xlu0 %v309, 96
    %v316 = vpop.permute.xlu0 %315
    %317 = vrot.lane.b32.xlu0 %v310, 96
    %v318 = vpop.permute.xlu0 %317
    %v320 = vsel %vm86, %v218, 0
    %v323 = vsel %vm86, %v312, 0
    %v326 = vsel %vm86, %v314, 0
    %v329 = vsel %vm86, %v316, 0
    %v332 = vsel %vm86, %v318, 0
    %334 = vmatpush.bf16.xpose.msra.mxu0 0
    %335 = vmatpush.bf16.xpose.msra.mxu0 0
    %336 = vmatpush.bf16.xpose.msra.mxu0 0
    %337 = vmatpush.bf16.xpose.msra.mxu0 0
    %338 = vmatpush.bf16.xpose.msra.mxu0 %v332
    %339 = vmatpush.bf16.xpose.msra.mxu0 %v329
    %340 = vmatpush.bf16.xpose.msra.mxu0 %v326
    %341 = vmatpush.bf16.xpose.msra.mxu0 %v323
    %342 = vmatmul.bf16.gmra.mxu0 %v320
    %v343 = vpop.f32.mrf.mxu0
    %v344 = vadd.f32 0.0, %v343
    %v345 = vpop.f32.mrf.mxu0
    %346 = vdwg.mxu0
    %vm347 = vcmask 523264
    %v348 = vsel %vm347, %v288, -inf
    %349 = vmax.xlane.f32.xlu0 %v348
    %v350 = vpop.xlane.xlu0 %349
    %v351 = vsel %vm347, %v344, -inf
    %352 = vmax.xlane.f32.xlu0 %v351
    %v353 = vpop.xlane.xlu0 %352
    %v354 = vsub.f32 %v288, %v350
    %v355 = vsub.f32 %v344, %v353
    %v356 = vmul.f32 %v354, 1.442695
    %v357 = vpow.pop %v356
    %v358 = vmul.f32 %v355, 1.442695
    %v359 = vpow.pop %v358
    %v361 = vsel %vm347, %v357, 0
    %v364 = vsel %vm347, %v359, 0
    %366 = vmatpush.msra.mxu0 0.0
    %367 = vmatpush.msra.mxu0 0.0
    %368 = vmatpush.msra.mxu0 0.0
    %369 = vmatpush.msra.mxu0 0.0
    %370 = vmatpush.msra.mxu0 0.0
    %371 = vmatpush.msra.mxu0 0.0
    %372 = vmatpush.msra.mxu0 0.0
    %373 = vmatpush.msra.mxu0 0.0
    %374 = vmatpush.msra.mxu0 %v83
    %375 = vmatpush.msra.mxu0 %v82
    %376 = vmatpush.msra.mxu0 %v81
    %377 = vmatpush.msra.mxu0 %v80
    %378 = vmatpush.msra.mxu0 %v79
    %379 = vmatpush.msra.mxu0 %v78
    %380 = vmatpush.msra.mxu0 %v77
    %381 = vmatpush.msra.mxu0 %v76
    %382 = vmatmul.f32.gmra.mxu0 %v361
    %v383 = vpop.f32.mrf.mxu0
    %v384 = vadd.f32 0.0, %v383
    %385 = vmatmul.f32.gmra.mxu0 %v364
    %v386 = vpop.f32.mrf.mxu0
    %v387 = vadd.f32 0.0, %v386
    %388 = vdwg.mxu0
    %v389 = vrcp.pop %v384
    %v390 = vrcp.pop %v387
    %v391 = vmul.f32 %v357, %v389
    %v392 = vmul.f32 %v359, %v390
    %v393 = vpack.c.bf16 %v391, %v391
    %v394 = vpack.c.bf16 %v392, %v392
    %v395 = vpack.c.bf16 %v201, %v201
    %v396 = vpack.c.bf16 %v202, %v202
    %v397 = vpack.c.bf16 %v203, %v203
    %v398 = vpack.c.bf16 %v204, %v204
    %v399 = vpack.c.bf16 %v205, %v205
    %v400 = vpack.c.bf16 %v206, %v206
    %v401 = vpack.c.bf16 %v207, %v207
    %v402 = vpack.c.bf16 %v208, %v208
    %v403 = vpack.c.bf16 %v209, %v209
    %v404 = vpack.c.bf16 %v210, %v210
    %v405 = vpack.c.bf16 %v211, %v211
    %v406 = vpack.c.bf16 %v212, %v212
    %v407 = vpack.c.bf16 %v213, %v213
    %v408 = vpack.c.bf16 %v214, %v214
    %v409 = vpack.c.bf16 %v215, %v215
    %v410 = vpack.c.bf16 %v216, %v216
    %v419 = vunpack.c.l.b16 %v395
    %v420 = vunpack.c.l.b16 %v396
    %v421 = vunpack.c.l.b16 %v397
    %v422 = vunpack.c.l.b16 %v398
    %v423 = vunpack.c.l.b16 %v399
    %v424 = vunpack.c.l.b16 %v400
    %v425 = vunpack.c.l.b16 %v401
    %v426 = vunpack.c.l.b16 %v402
    %v427 = vpack.c.b16 %v420, %v419
    %v428 = vpack.c.b16 %v422, %v421
    %v429 = vpack.c.b16 %v424, %v423
    %v430 = vpack.c.b16 %v426, %v425
    %431 = vrot.lane.b32.xlu0 %v427, 64
    %v432 = vpop.permute.xlu0 %431
    %433 = vrot.lane.b32.xlu0 %v428, 64
    %v434 = vpop.permute.xlu0 %433
    %435 = vrot.lane.b32.xlu0 %v429, 64
    %v436 = vpop.permute.xlu0 %435
    %437 = vrot.lane.b32.xlu0 %v430, 64
    %v438 = vpop.permute.xlu0 %437
    %v444 = vsel %vm347, %v393, 0
    %446 = vmatpush.bf16.msra.mxu0 0
    %447 = vmatpush.bf16.msra.mxu0 0
    %448 = vmatpush.bf16.msra.mxu0 0
    %449 = vmatpush.bf16.msra.mxu0 0
    %450 = vmatpush.bf16.msra.mxu0 %v438
    %451 = vmatpush.bf16.msra.mxu0 %v436
    %452 = vmatpush.bf16.msra.mxu0 %v434
    %453 = vmatpush.bf16.msra.mxu0 %v432
    %454 = vmatmul.bf16.gmra.mxu0 %v444
    %v455 = vpop.f32.mrf.mxu0
    %v456 = vadd.f32 0.0, %v455
    %v457 = vpop.f32.mrf.mxu0
    %458 = vdwg.mxu0
    %v467 = vunpack.c.l.b16 %v403
    %v468 = vunpack.c.l.b16 %v404
    %v469 = vunpack.c.l.b16 %v405
    %v470 = vunpack.c.l.b16 %v406
    %v471 = vunpack.c.l.b16 %v407
    %v472 = vunpack.c.l.b16 %v408
    %v473 = vunpack.c.l.b16 %v409
    %v474 = vunpack.c.l.b16 %v410
    %v475 = vpack.c.b16 %v468, %v467
    %v476 = vpack.c.b16 %v470, %v469
    %v477 = vpack.c.b16 %v472, %v471
    %v478 = vpack.c.b16 %v474, %v473
    %479 = vrot.lane.b32.xlu0 %v475, 64
    %v480 = vpop.permute.xlu0 %479
    %481 = vrot.lane.b32.xlu0 %v476, 64
    %v482 = vpop.permute.xlu0 %481
    %483 = vrot.lane.b32.xlu0 %v477, 64
    %v484 = vpop.permute.xlu0 %483
    %485 = vrot.lane.b32.xlu0 %v478, 64
    %v486 = vpop.permute.xlu0 %485
    %v492 = vsel %vm347, %v394, 0
    %494 = vmatpush.bf16.msra.mxu0 0
    %495 = vmatpush.bf16.msra.mxu0 0
    %496 = vmatpush.bf16.msra.mxu0 0
    %497 = vmatpush.bf16.msra.mxu0 0
    %498 = vmatpush.bf16.msra.mxu0 %v486
    %499 = vmatpush.bf16.msra.mxu0 %v484
    %500 = vmatpush.bf16.msra.mxu0 %v482
    %501 = vmatpush.bf16.msra.mxu0 %v480
    %502 = vmatmul.bf16.gmra.mxu0 %v492
    %v503 = vpop.f32.mrf.mxu0
    %v504 = vadd.f32 0.0, %v503
    %v505 = vpop.f32.mrf.mxu0
    %506 = vdwg.mxu0
    %v507 = vpack.c.bf16 %v504, %v456
    %v508 = vperm.slane %v29, 0
    %v510 = vsel %vm86, %v507, 0
    %512 = vmatpush.bf16.msra.mxu0 0
    %513 = vmatpush.bf16.msra.mxu0 0
    %514 = vmatpush.bf16.msra.mxu0 0
    %515 = vmatpush.bf16.msra.mxu0 0
    %516 = vmatpush.bf16.msra.mxu0 0
    %517 = vmatpush.bf16.msra.mxu0 0
    %518 = vmatpush.bf16.msra.mxu0 %v31
    %519 = vmatpush.bf16.msra.mxu0 %v30
    %520 = vmatmul.bf16.gmra.mxu0 %v510
    %v521 = vpop.f32.mrf.mxu0
    %v522 = vadd.f32 %v508, %v521
    %v523 = vpop.f32.mrf.mxu0
    %v524 = vadd.f32 %v508, %v523
    %525 = vdwg.mxu0
    %v526 = vadd.f32 %v522, %v16
    %v527 = vadd.f32 %v524, %v17
    %v528 = vsel %vm86, %v526, 0.0
    %529 = vadd.xlane.f32.xlu0 %v528
    %v530 = vpop.xlane.xlu0 %529
    %v531 = vsel %vm86, %v527, 0.0
    %532 = vadd.xlane.f32.xlu0 %v531
    %v533 = vpop.xlane.xlu0 %532
    %v534 = vrcp.pop 32.0
    %v535 = vmul.f32 32.0, %v534
    %v536 = vsub.f32 1.0, %v535
    %v537 = vmul.f32 %v534, %v536
    %v538 = vadd.f32 %v534, %v537
    %vm539 = vweird.f32 %v534
    %v540 = vsel %vm539, %v534, %v538
    %v541 = vmul.f32 %v530, %v540
    %v542 = vmul.f32 %v533, %v540
    %v543 = vsub.f32 %v526, %v541
    %v544 = vsub.f32 %v527, %v542
    %v545 = vmul.f32 %v543, %v543
    %v546 = vmul.f32 %v544, %v544
    %v547 = vsel %vm86, %v545, 0.0
    %548 = vadd.xlane.f32.xlu0 %v547
    %v549 = vpop.xlane.xlu0 %548
    %v550 = vsel %vm86, %v546, 0.0
    %551 = vadd.xlane.f32.xlu0 %v550
    %v552 = vpop.xlane.xlu0 %551
    %v553 = vmul.f32 %v549, %v540
    %v554 = vmul.f32 %v552, %v540
    %v555 = vadd.f32 %v553, 1e-12
    %v556 = vadd.f32 %v554, 1e-12
    %v557 = vrsqrt.pop %v555
    %v558 = vmul.f32 %v557, %v555
    %v559 = vmul.f32 %v558, %v557
    %v560 = vmul.f32 0.5, %v559
    %v561 = vsub.f32 1.5, %v560
    %v562 = vmul.f32 %v557, %v561
    %vm563 = vweird.f32 %v555
    %vm564 = vweird.f32 %v557
    %vm565 = vmor %vm563, %vm564
    %v566 = vsel %vm565, %v557, %v562
    %v567 = vrsqrt.pop %v556
    %v568 = vmul.f32 %v567, %v556
    %v569 = vmul.f32 %v568, %v567
    %v570 = vmul.f32 0.5, %v569
    %v571 = vsub.f32 1.5, %v570
    %v572 = vmul.f32 %v567, %v571
    %vm573 = vweird.f32 %v556
    %vm574 = vweird.f32 %v567
    %vm575 = vmor %vm573, %vm574
    %v576 = vsel %vm575, %v567, %v572
    %v577 = vmul.f32 %v543, %v566
    %v578 = vmul.f32 %v544, %v576
    %v579 = vperm.slane %v29, 1
    %v580 = vmul.f32 %v577, %v579
    %v581 = vmul.f32 %v578, %v579
    %v582 = vperm.slane %v29, 2
    %v583 = vadd.f32 %v580, %v582
    %v584 = vadd.f32 %v581, %v582
    %v585 = vmul.f32 %v583, %v583
    %v586 = vmul.f32 %v584, %v584
    %v587 = vsel %vm86, %v585, 0.0
    %588 = vadd.xlane.f32.xlu0 %v587
    %v589 = vpop.xlane.xlu0 %588
    %v590 = vsel %vm86, %v586, 0.0
    %591 = vadd.xlane.f32.xlu0 %v590
    %v592 = vpop.xlane.xlu0 %591
    %v593 = vadd.f32 %v589, 1e-24
    %v594 = vadd.f32 %v592, 1e-24
    %v595 = vrsqrt.pop %v593
    %v596 = vmul.f32 %v595, %v593
    %v597 = vmul.f32 %v596, %v595
    %v598 = vmul.f32 0.5, %v597
    %v599 = vsub.f32 1.5, %v598
    %v600 = vmul.f32 %v595, %v599
    %vm601 = vweird.f32 %v593
    %vm602 = vweird.f32 %v595
    %vm603 = vmor %vm601, %vm602
    %v604 = vsel %vm603, %v595, %v600
    %v605 = vrsqrt.pop %v594
    %v606 = vmul.f32 %v605, %v594
    %v607 = vmul.f32 %v606, %v605
    %v608 = vmul.f32 0.5, %v607
    %v609 = vsub.f32 1.5, %v608
    %v610 = vmul.f32 %v605, %v609
    %vm611 = vweird.f32 %v594
    %vm612 = vweird.f32 %v605
    %vm613 = vmor %vm611, %vm612
    %v614 = vsel %vm613, %v605, %v610
    %v615 = vmul.f32 %v583, %v604
    %v616 = vmul.f32 %v584, %v614
    %617 = vst.msk [vmem:[#allocation2] sm:$0xff] %vm86, %v615
    %618 = vst.msk [vmem:[#allocation2 + $0x8] sm:$0xff] %vm86, %v616
    // Predicated region
    $region14: #{tpu_custom_call.1} parent=1 // pred_check
      _
    $region15: #{tpu_custom_call.1} parent=1 // pred_check_branch
      %620 = sbr.rel (0) target = $region17
    $region16: #{tpu_custom_call.1} parent=1 // pred_region
      %622 = vsyncadd [#allocation3], 0
      %s623 = sshll.u32 [#allocation2], 4
      %s624 = int_to_ptr.vmem [resolvable:$true] %s623
      %s625 = sshll.u32 %s3, 4
      %s626 = int_to_ptr.hbm [resolvable:$true] %s625
      %631 = dma.vmem_to_hbm [thread:$0]  %s624, 256, %s626, [#allocation3], 128, 128, 8
    $region17: #{tpu_custom_call.1} parent=1 // pred_fallthru
      _
    // Predicated region
    $region18: #{tpu_custom_call.1} parent=1 // pred_check
      _
    $region19: #{tpu_custom_call.1} parent=1 // pred_check_branch
      %633 = sbr.rel (0) target = $region21
    $region20: #{tpu_custom_call.1} parent=1 // pred_region
      %635 = dma.done [#allocation3], 256
    $region21: #{tpu_custom_call.1} parent=1 // pred_fallthru
      _
    %636 = vsyncpa [#allocation3], 1

</llo_original>
